<compile_context>
chip_gen: v7x
topology: tpu7x:2x2x1
jax: 0.10.0
libtpu: 0.0.40
codegen_flags: <defaults>
</compile_context>

<pallas_src>
import functools
import math

import jax
import jax.numpy as jnp
from jax import lax
from jax.experimental import pallas as pl
from jax.experimental.pallas import tpu as pltpu

_LN_EPS = 1e-12
_VMEM_LIMIT = 64 * 1024 * 1024  # explicit scoped-VMEM budget (safe on v5e/v6e/v7x)


# ----------------------------- in-kernel helpers ----------------------------

def _ln(x, g, b, eps):
    mean = jnp.mean(x, axis=-1, keepdims=True)
    var = jnp.mean(jnp.square(x - mean), axis=-1, keepdims=True)
    return (x - mean) * lax.rsqrt(var + eps) * g + b


def _gelu(y):
    # TODO(synk): HF BERT default is exact erf-GELU; tanh approximation kept for
    # robust Mosaic lowering of the transcendental.
    c = math.sqrt(2.0 / math.pi)
    return 0.5 * y * (1.0 + jnp.tanh(c * (y + 0.044715 * y * y * y)))


def _mm(a, w_bf16, b_f32):
    """bf16 MXU matmul with fp32 accumulation + fp32 bias."""
    return jnp.dot(a.astype(jnp.bfloat16), w_bf16,
                   preferred_element_type=jnp.float32) + b_f32


# ----------------------------- Pallas kernels ------------------------------

def _embed_ln_kernel(we_ref, tt_ref, pe_ref, te_ref, g_ref, b_ref, o_ref, *, eps):
    we = we_ref[...].astype(jnp.float32)                 # (S, H) gathered word emb (bf16 in HBM)
    tt = tt_ref[...].astype(jnp.float32)                 # (S, 1) token-type ids in {0, 1}
    # In-kernel "gather" of the 2-row token-type table (resident in VMEM):
    # exact lerp between row 0 and row 1 since type ids are 0/1 (BERT type_vocab_size == 2).
    t0 = te_ref[0:1, :]
    t1 = te_ref[1:2, :]
    te = t0 + tt * (t1 - t0)                             # (S, H)
    x = we + pe_ref[...] + te
    o_ref[...] = _ln(x, g_ref[...], b_ref[...], eps).astype(o_ref.dtype)


def _layer_kernel(x_ref, m_ref,
                  qkv_w_ref, qkv_b_ref, ao_w_ref, ao_b_ref,
                  ln1_g_ref, ln1_b_ref,
                  fi_w_ref, fi_b_ref, fo_w_ref, fo_b_ref,
                  ln2_g_ref, ln2_b_ref,
                  o_ref, ctx_ref, *, heads, eps):
    x_bf = x_ref[...]                                    # (S, H) bf16 activations from HBM
    x = x_bf.astype(jnp.float32)                         # fp32 for residual / layernorm
    S, H = x.shape
    d = H // heads
    mask = m_ref[...]                                    # (1, S) additive fp32 mask

    # Fused QKV projection: one MXU pass over the concatenated (H, 3H) weight.
    # 1/sqrt(d_head) is already folded into the Q block of qkv_w / qkv_b.
    qkv = _mm(x_bf, qkv_w_ref[...], qkv_b_ref[...])      # (S, 3H) fp32

    # Per-head attention.  K^T is folded into the dot_general dimension numbers (NT
    # matmul) so no XLU transpose is materialized; each head's context goes to its
    # static lane slice of a VMEM scratch, so no lane-concat shuffle is needed either.
    # TODO(synk): at bert-base (12 heads, d=64) process 2 heads per iteration with a
    # lax.fori_loop so lane offsets are 128-aligned and trace/vreg pressure stays bounded.
    for h in range(heads):
        q = qkv[:, h * d:(h + 1) * d].astype(jnp.bfloat16)
        k = qkv[:, H + h * d:H + (h + 1) * d].astype(jnp.bfloat16)
        v = qkv[:, 2 * H + h * d:2 * H + (h + 1) * d].astype(jnp.bfloat16)
        s = lax.dot_general(q, k, (((1,), (1,)), ((), ())),
                            preferred_element_type=jnp.float32) + mask
        s = s - jnp.max(s, axis=-1, keepdims=True)
        p = jnp.exp(s)
        p = p * pl.reciprocal(jnp.sum(p, axis=-1, keepdims=True), approx=True)
        ctx_ref[:, h * d:(h + 1) * d] = jnp.dot(
            p.astype(jnp.bfloat16), v, preferred_element_type=jnp.float32)

    # Attention output projection (single fused MXU pass) + residual + layernorm.
    attn_out = _mm(ctx_ref[...], ao_w_ref[...], ao_b_ref[...])
    x1 = _ln(attn_out + x, ln1_g_ref[...], ln1_b_ref[...], eps)

    # FFN (gelu) + residual + layernorm (fused epilogue); store bf16 to HBM.
    ff = _gelu(_mm(x1, fi_w_ref[...], fi_b_ref[...]))
    ff = _mm(ff, fo_w_ref[...], fo_b_ref[...])
    o_ref[...] = _ln(ff + x1, ln2_g_ref[...], ln2_b_ref[...], eps).astype(o_ref.dtype)


def _head_kernel(cls_ref, pw_ref, pb_ref, ow_ref, ob_ref, o_ref):
    # BERT pooler: tanh(dense(hidden_states[:, 0])) == pooled "output2" of self.bert(...).
    pooled = jnp.tanh(_mm(cls_ref[...], pw_ref[...], pb_ref[...]))
    # TODO(synk): nn.Dropout(0.3) is inference-time identity here (eval mode).
    o_ref[...] = _mm(pooled, ow_ref[...], ob_ref[...])   # (B, 128) lane-padded, fp32


# ------------------------------ kernel wrappers -----------------------------

def embed_layernorm(we, tt, pos_emb, type_emb, g, b):
    B, S, H = we.shape
    T = type_emb.shape[0]
    return pl.pallas_call(
        functools.partial(_embed_ln_kernel, eps=_LN_EPS),
        out_shape=jax.ShapeDtypeStruct((B, S, H), jnp.bfloat16),
        grid=(B,),
        in_specs=[
            pl.BlockSpec((None, S, H), lambda i: (i, 0, 0)),   # gathered word-emb rows (bf16)
            pl.BlockSpec((None, S, 1), lambda i: (i, 0, 0)),   # token-type ids (S, 1)
            pl.BlockSpec((S, H), lambda i: (0, 0)),            # pos emb rows [:S], resident
            pl.BlockSpec((T, H), lambda i: (0, 0)),            # full 2-row type table, resident
            pl.BlockSpec((1, H), lambda i: (0, 0)),
            pl.BlockSpec((1, H), lambda i: (0, 0)),
        ],
        out_specs=pl.BlockSpec((None, S, H), lambda i: (i, 0, 0)),
        compiler_params=pltpu.CompilerParams(
            dimension_semantics=("parallel",),
            vmem_limit_bytes=_VMEM_LIMIT),
    )(we, tt, pos_emb, type_emb, g, b)


def encoder_layer(x, ext_mask, lp, cfg):
    B, S, H = x.shape
    NH, I = cfg["heads"], cfg["intermediate"]
    const = lambda b: (0, 0)
    return pl.pallas_call(
        functools.partial(_layer_kernel, heads=NH, eps=_LN_EPS),
        out_shape=jax.ShapeDtypeStruct((B, S, H), jnp.bfloat16),
        grid=(B,),
        in_specs=[
            pl.BlockSpec((None, S, H), lambda b: (b, 0, 0)),   # bf16 activations
            pl.BlockSpec((None, 1, S), lambda b: (b, 0, 0)),   # additive mask (fp32)
            # Weights/biases: constant index maps keep them VMEM-resident across the
            # batch grid (no re-DMA).  TODO(synk): at bert-base mark these
            # pipeline_mode=pl.Buffered(1) and add a query-tile grid axis (see header).
            pl.BlockSpec((H, 3 * H), const),
            pl.BlockSpec((1, 3 * H), const),
            pl.BlockSpec((H, H), const),
            pl.BlockSpec((1, H), const),
            pl.BlockSpec((1, H), const),
            pl.BlockSpec((1, H), const),
            pl.BlockSpec((H, I), const),
            pl.BlockSpec((1, I), const),
            pl.BlockSpec((I, H), const),
            pl.BlockSpec((1, H), const),
            pl.BlockSpec((1, H), const),
            pl.BlockSpec((1, H), const),
        ],
        out_specs=pl.BlockSpec((None, S, H), lambda b: (b, 0, 0)),
        scratch_shapes=[pltpu.VMEM((S, H), jnp.float32)],       # per-head ctx staging
        compiler_params=pltpu.CompilerParams(
            dimension_semantics=("parallel",),
            vmem_limit_bytes=_VMEM_LIMIT),
    )(x, ext_mask, lp["qkv_w"], lp["qkv_b"], lp["ao_w"], lp["ao_b"],
      lp["ln1_g"], lp["ln1_b"], lp["fi_w"], lp["fi_b"], lp["fo_w"], lp["fo_b"],
      lp["ln2_g"], lp["ln2_b"])


def pooler_classifier(x, pool_w, pool_b, out_w_pad, out_b_pad, n_classes):
    B, S, H = x.shape
    Npad = out_w_pad.shape[1]
    logits_pad = pl.pallas_call(
        _head_kernel,
        out_shape=jax.ShapeDtypeStruct((B, Npad), jnp.float32),
        grid=(1,),
        in_specs=[
            pl.BlockSpec((B, None, H), lambda i: (0, 0, 0)),   # CLS slice via BlockSpec (bf16)
            pl.BlockSpec((H, H), lambda i: (0, 0)),
            pl.BlockSpec((1, H), lambda i: (0, 0)),
            pl.BlockSpec((H, Npad), lambda i: (0, 0)),
            pl.BlockSpec((1, Npad), lambda i: (0, 0)),
        ],
        out_specs=pl.BlockSpec((B, Npad), lambda i: (0, 0)),
        compiler_params=pltpu.CompilerParams(vmem_limit_bytes=_VMEM_LIMIT),
    )(x, pool_w, pool_b, out_w_pad, out_b_pad)
    # Keep the 128-lane-padded store unmasked; slice the 30 real classes outside.
    return logits_pad[:, :n_classes]


# ------------------------------ parameter init -----------------------------

def init_params(key, cfg):
    # TODO(synk): transformers.BertModel.from_pretrained(bert_path) weight loading has no
    # in-script equivalent; deterministic random init with the same architecture is used.
    H, I, NH = cfg["hidden"], cfg["intermediate"], cfg["heads"]
    V, P, T, C = cfg["vocab"], cfg["max_pos"], cfg["type_vocab"], cfg["n_classes"]
    std = 0.02
    C_pad = 128 * pl.cdiv(C, 128)
    att_scale = 1.0 / math.sqrt(H // NH)

    def nrm(k, shape, dtype=jnp.float32):
        return (std * jax.random.normal(k, shape, dtype=jnp.float32)).astype(dtype)

    keys = iter(jax.random.split(key, 16 + 8 * cfg["layers"]))
    out_w = nrm(next(keys), (H, C), jnp.bfloat16)
    params = {
        "word_emb": nrm(next(keys), (V, H), jnp.bfloat16),      # bf16 table: half gather traffic
        "pos_emb": nrm(next(keys), (P, H)),
        "type_emb": nrm(next(keys), (T, H)),
        "emb_ln_g": jnp.ones((1, H), jnp.float32),
        "emb_ln_b": jnp.zeros((1, H), jnp.float32),
        "pool_w": nrm(next(keys), (H, H), jnp.bfloat16),
        "pool_b": jnp.zeros((1, H), jnp.float32),
        # 30-class head kept lane-padded to 128 so the final store is not masked.
        "out_w_pad": jnp.zeros((H, C_pad), jnp.bfloat16).at[:, :C].set(out_w),
        "out_b_pad": jnp.zeros((1, C_pad), jnp.float32),
        "layers": [],
    }
    for _ in range(cfg["layers"]):
        # Q, K, V fused into one (H, 3H) weight / (1, 3H) bias; fold 1/sqrt(d_head)
        # into the Q block at init time (free host-side weight transform).
        qkv_w = std * jax.random.normal(next(keys), (H, 3 * H), dtype=jnp.float32)
        qkv_w = qkv_w.at[:, :H].multiply(att_scale)
        qkv_b = jnp.zeros((1, 3 * H), jnp.float32).at[:, :H].multiply(att_scale)
        params["layers"].append({
            "qkv_w": qkv_w.astype(jnp.bfloat16),
            "qkv_b": qkv_b,
            "ao_w": nrm(next(keys), (H, H), jnp.bfloat16),
            "ao_b": jnp.zeros((1, H), jnp.float32),
            "ln1_g": jnp.ones((1, H), jnp.float32),
            "ln1_b": jnp.zeros((1, H), jnp.float32),
            "fi_w": nrm(next(keys), (H, I), jnp.bfloat16),
            "fi_b": jnp.zeros((1, I), jnp.float32),
            "fo_w": nrm(next(keys), (I, H), jnp.bfloat16),
            "fo_b": jnp.zeros((1, H), jnp.float32),
            "ln2_g": jnp.ones((1, H), jnp.float32),
            "ln2_b": jnp.zeros((1, H), jnp.float32),
        })
    return params


# ------------------------------- forward pass -------------------------------

def bert_based_uncased_forward(params, ids, mask, token_type_ids, cfg):
    B, S = ids.shape

    # TODO(synk): the word-embedding row gather stays in XLA (no clean rectangular
    # BlockSpec gather at a per-batch grid); it reads a bf16 table so the materialized
    # (B,S,H) intermediate is half-sized.  The token-type gather is done in-kernel.
    we = params["word_emb"][ids]                                   # (B, S, H) bf16
    tt = token_type_ids[..., None].astype(jnp.int32)               # (B, S, 1)
    x = embed_layernorm(we, tt, params["pos_emb"], params["type_emb"],
                        params["emb_ln_g"], params["emb_ln_b"])    # (B, S, H) bf16

    # Additive attention mask, per batch (heads broadcast inside the kernel).
    ext = ((1.0 - mask.astype(jnp.float32)) * -10000.0)[:, None, :]  # (B, 1, S) fp32

    for lp in params["layers"]:
        # TODO(synk): hide layer L+1's weight DMA behind layer L (cross-call DMA future
        # or all-layers fused kernel with manual double-buffered weight copies).
        x = encoder_layer(x, ext, lp, cfg)                         # one pallas_call/layer

    # Fused pooler (CLS -> tanh dense) + dropout(identity) + 30-class classifier.
    logits = pooler_classifier(x, params["pool_w"], params["pool_b"],
                               params["out_w_pad"], params["out_b_pad"],
                               cfg["n_classes"])                   # (B, 30) fp32
    return logits


# ----------------------------------- main -----------------------------------

if __name__ == "__main__":
    cfg = dict(hidden=32, heads=4, layers=2, intermediate=64,
               vocab=100, max_pos=16, type_vocab=2, n_classes=30)
    B, S = 2, 8

    root = jax.random.PRNGKey(0)
    k_param, k_ids = jax.random.split(root, 2)

    params = init_params(k_param, cfg)

    ids = jax.random.randint(k_ids, (B, S), 0, cfg["vocab"], dtype=jnp.int32)
    mask = jnp.ones((B, S), jnp.int32).at[1, 6:].set(0)            # pad last 2 tokens of row 1
    token_type_ids = jnp.concatenate(
        [jnp.zeros((B, S // 2), jnp.int32), jnp.ones((B, S // 2), jnp.int32)], axis=1)

    logits = bert_based_uncased_forward(params, ids, mask, token_type_ids, cfg)
    logits = jax.block_until_ready(logits)

    assert logits.shape == (B, cfg["n_classes"]) and logits.dtype == jnp.float32
    print("KERNEL_OK")
</pallas_src>

<mosaic_0001>
module attributes {stable_mosaic.version = 11 : i64} {
  func.func @_embed_ln_kernel(%arg0: i32, %arg1: memref<1x8x32xbf16, #tpu.memory_space<vmem>>, %arg2: memref<1x8x1xi32, #tpu.memory_space<vmem>>, %arg3: memref<8x32xf32, #tpu.memory_space<vmem>>, %arg4: memref<2x32xf32, #tpu.memory_space<vmem>>, %arg5: memref<1x32xf32, #tpu.memory_space<vmem>>, %arg6: memref<1x32xf32, #tpu.memory_space<vmem>>, %arg7: memref<1x8x32xbf16, #tpu.memory_space<vmem>>) attributes {dimension_semantics = [#tpu.dimension_semantics<parallel>], iteration_bounds = array<i64: 2>, scalar_prefetch = 0 : i64, scratch_operands = 0 : i64, tpu.core_type = #tpu.core_type<tc>, window_params = [{transform_indices = @transform_0, window_bounds = array<i64: 1, 8, 32>}, {transform_indices = @transform_1, window_bounds = array<i64: 1, 8, 1>}, {transform_indices = @transform_2, window_bounds = array<i64: 8, 32>}, {pipeline_mode = #tpu.pipeline_mode<synchronous>, transform_indices = @transform_3, window_bounds = array<i64: 2, 32>}, {pipeline_mode = #tpu.pipeline_mode<synchronous>, transform_indices = @transform_4, window_bounds = array<i64: 1, 32>}, {pipeline_mode = #tpu.pipeline_mode<synchronous>, transform_indices = @transform_5, window_bounds = array<i64: 1, 32>}, {transform_indices = @transform_6, window_bounds = array<i64: 1, 8, 32>}]} {
    %c0 = arith.constant 0 : index
    %c0_0 = arith.constant 0 : index
    %c0_1 = arith.constant 0 : index
    %0 = vector.load %arg1[%c0, %c0_0, %c0_1] : memref<1x8x32xbf16, #tpu.memory_space<vmem>>, vector<1x8x32xbf16>
    %1 = vector.shape_cast %0 : vector<1x8x32xbf16> to vector<8x32xbf16>
    %2 = arith.extf %1 : vector<8x32xbf16> to vector<8x32xf32>
    %c0_2 = arith.constant 0 : index
    %c0_3 = arith.constant 0 : index
    %c0_4 = arith.constant 0 : index
    %3 = vector.load %arg2[%c0_2, %c0_3, %c0_4] : memref<1x8x1xi32, #tpu.memory_space<vmem>>, vector<1x8x1xi32>
    %4 = vector.shape_cast %3 : vector<1x8x1xi32> to vector<8x1xi32>
    %5 = arith.sitofp %4 : vector<8x1xi32> to vector<8x1xf32>
    %c0_5 = arith.constant 0 : index
    %c0_6 = arith.constant 0 : index
    %6 = vector.load %arg4[%c0_5, %c0_6] : memref<2x32xf32, #tpu.memory_space<vmem>>, vector<1x32xf32>
    %c1 = arith.constant 1 : index
    %c0_7 = arith.constant 0 : index
    %7 = vector.load %arg4[%c1, %c0_7] : memref<2x32xf32, #tpu.memory_space<vmem>>, vector<1x32xf32>
    %8 = arith.subf %7, %6 : vector<1x32xf32>
    %9 = vector.broadcast %5 : vector<8x1xf32> to vector<8x32xf32>
    %10 = vector.broadcast %8 : vector<1x32xf32> to vector<8x32xf32>
    %11 = arith.mulf %9, %10 : vector<8x32xf32>
    %12 = vector.broadcast %6 : vector<1x32xf32> to vector<8x32xf32>
    %13 = arith.addf %12, %11 : vector<8x32xf32>
    %c0_8 = arith.constant 0 : index
    %c0_9 = arith.constant 0 : index
    %14 = vector.load %arg3[%c0_8, %c0_9] : memref<8x32xf32, #tpu.memory_space<vmem>>, vector<8x32xf32>
    %15 = arith.addf %2, %14 : vector<8x32xf32>
    %16 = arith.addf %15, %13 : vector<8x32xf32>
    %c0_10 = arith.constant 0 : index
    %c0_11 = arith.constant 0 : index
    %17 = vector.load %arg5[%c0_10, %c0_11] : memref<1x32xf32, #tpu.memory_space<vmem>>, vector<1x32xf32>
    %c0_12 = arith.constant 0 : index
    %c0_13 = arith.constant 0 : index
    %18 = vector.load %arg6[%c0_12, %c0_13] : memref<1x32xf32, #tpu.memory_space<vmem>>, vector<1x32xf32>
    %cst = arith.constant dense<0.000000e+00> : vector<8xf32>
    %19 = vector.multi_reduction <add>, %16, %cst [1] : vector<8x32xf32> to vector<8xf32>
    %20 = vector.shape_cast %19 : vector<8xf32> to vector<8x1xf32>
    %cst_14 = arith.constant 3.200000e+01 : f32
    %21 = vector.broadcast %cst_14 : f32 to vector<8x1xf32>
    %22 = arith.divf %20, %21 : vector<8x1xf32>
    %23 = vector.broadcast %22 : vector<8x1xf32> to vector<8x32xf32>
    %24 = arith.subf %16, %23 : vector<8x32xf32>
    %25 = arith.mulf %24, %24 : vector<8x32xf32>
    %cst_15 = arith.constant dense<0.000000e+00> : vector<8xf32>
    %26 = vector.multi_reduction <add>, %25, %cst_15 [1] : vector<8x32xf32> to vector<8xf32>
    %27 = vector.shape_cast %26 : vector<8xf32> to vector<8x1xf32>
    %cst_16 = arith.constant 3.200000e+01 : f32
    %28 = vector.broadcast %cst_16 : f32 to vector<8x1xf32>
    %29 = arith.divf %27, %28 : vector<8x1xf32>
    %30 = vector.broadcast %22 : vector<8x1xf32> to vector<8x32xf32>
    %31 = arith.subf %16, %30 : vector<8x32xf32>
    %cst_17 = arith.constant 9.99999996E-13 : f32
    %32 = vector.broadcast %cst_17 : f32 to vector<8x1xf32>
    %33 = arith.addf %29, %32 : vector<8x1xf32>
    %34 = math.rsqrt %33 : vector<8x1xf32>
    %35 = vector.broadcast %34 : vector<8x1xf32> to vector<8x32xf32>
    %36 = arith.mulf %31, %35 : vector<8x32xf32>
    %37 = vector.broadcast %17 : vector<1x32xf32> to vector<8x32xf32>
    %38 = arith.mulf %36, %37 : vector<8x32xf32>
    %39 = vector.broadcast %18 : vector<1x32xf32> to vector<8x32xf32>
    %40 = arith.addf %38, %39 : vector<8x32xf32>
    %41 = arith.truncf %40 : vector<8x32xf32> to vector<8x32xbf16>
    %c0_18 = arith.constant 0 : index
    %c0_19 = arith.constant 0 : index
    %c0_20 = arith.constant 0 : index
    %42 = vector.load %arg7[%c0_18, %c0_19, %c0_20] : memref<1x8x32xbf16, #tpu.memory_space<vmem>>, vector<1x8x32xbf16>
    %43 = vector.shape_cast %42 : vector<1x8x32xbf16> to vector<8x32xbf16>
    %44 = vector.shape_cast %41 : vector<8x32xbf16> to vector<1x8x32xbf16>
    tpu.vector_store %arg7[%c0_18, %c0_19, %c0_20], %44 {strides = array<i32>} : memref<1x8x32xbf16, #tpu.memory_space<vmem>>, vector<1x8x32xbf16>,
    return
  }
  func.func @transform_0(%arg0: i32) -> (i32, i32, i32) {
    %c0_i32 = arith.constant 0 : i32
    %c0_i32_0 = arith.constant 0 : i32
    %c0_i32_1 = arith.constant 0 : i32
    return %arg0, %c0_i32, %c0_i32_0 : i32, i32, i32
  }
  func.func @transform_1(%arg0: i32) -> (i32, i32, i32) {
    %c0_i32 = arith.constant 0 : i32
    %c0_i32_0 = arith.constant 0 : i32
    %c0_i32_1 = arith.constant 0 : i32
    return %arg0, %c0_i32, %c0_i32_0 : i32, i32, i32
  }
  func.func @transform_2(%arg0: i32) -> (i32, i32) {
    %c0_i32 = arith.constant 0 : i32
    %c0_i32_0 = arith.constant 0 : i32
    %c0_i32_1 = arith.constant 0 : i32
    return %c0_i32, %c0_i32_0 : i32, i32
  }
  func.func @transform_3(%arg0: i32) -> (i32, i32) {
    %c0_i32 = arith.constant 0 : i32
    %c0_i32_0 = arith.constant 0 : i32
    %c0_i32_1 = arith.constant 0 : i32
    return %c0_i32, %c0_i32_0 : i32, i32
  }
  func.func @transform_4(%arg0: i32) -> (i32, i32) {
    %c0_i32 = arith.constant 0 : i32
    %c0_i32_0 = arith.constant 0 : i32
    %c0_i32_1 = arith.constant 0 : i32
    return %c0_i32, %c0_i32_0 : i32, i32
  }
  func.func @transform_5(%arg0: i32) -> (i32, i32) {
    %c0_i32 = arith.constant 0 : i32
    %c0_i32_0 = arith.constant 0 : i32
    %c0_i32_1 = arith.constant 0 : i32
    return %c0_i32, %c0_i32_0 : i32, i32
  }
  func.func @transform_6(%arg0: i32) -> (i32, i32, i32) {
    %c0_i32 = arith.constant 0 : i32
    %c0_i32_0 = arith.constant 0 : i32
    %c0_i32_1 = arith.constant 0 : i32
    return %arg0, %c0_i32, %c0_i32_0 : i32, i32, i32
  }
}

</mosaic_0001>

<llo_original>
// kernel: tpu_custom_call.1
$region0: #{tpu_custom_call.1}
  #allocation0 [shape = 'u32[]', space=smem, size = 0x4, offset = 0x4, fixed_abs, tag = 'smem constant byte address 0x4 - core index']
  #allocation1 [shape = 'u32[144,128]{1,0:T(1,128)}', space=vmem, size = 0x12000, scoped, tag = 'internal scratch']
  %s0 = inlined_call_operand.hbm [shape: bf16[2,8,32], index: 0, kind: input, shape index: {}]
  %s1 = inlined_call_operand.hbm [shape: s32[2,8,1], index: 1, kind: input, shape index: {}]
  %s2 = inlined_call_operand.hbm [shape: f32[16,32], index: 2, kind: input, shape index: {}]
  %s3 = inlined_call_operand.hbm [shape: f32[2,32], index: 3, kind: input, shape index: {}]
  %s4 = inlined_call_operand.hbm [shape: f32[1,32], index: 4, kind: input, shape index: {}]
  %s5 = inlined_call_operand.hbm [shape: f32[1,32], index: 5, kind: input, shape index: {}]
  %s6 = inlined_call_operand.hbm [shape: bf16[2,8,32], index: 6, kind: output, shape index: {}]
  %s7 = sld [smem:[#allocation0]]
  $region81: #{tpu_custom_call.1} parent=0
    _
  %s9 = ssub.s32 1, %s7
  %s10 = scalar_select 0, %s9, %s7
  $region1: #{tpu_custom_call.1} parent=0
    #allocation2 [shape = 'u8[4096]{0}', space=vmem, size = 0x1000, scoped, tag = 'input window, operand 0']
    #allocation3 [shape = 's32[2]{0}', space=sflag, size = 0x8, scoped, tag = 'scoped memory for tpu_custom_call.1']
    #allocation4 [shape = 's32[2]{0}', space=sflag, size = 0x8, scoped, tag = 'scoped memory for tpu_custom_call.1']
    #allocation5 [shape = 'u8[8192]{0}', space=vmem, size = 0x2000, scoped, tag = 'input window, operand 1']
    #allocation6 [shape = 's32[2]{0}', space=sflag, size = 0x8, scoped, tag = 'scoped memory for tpu_custom_call.1']
    #allocation7 [shape = 'u8[4096]{0}', space=vmem, size = 0x1000, scoped, tag = 'input window, operand 2, single buffered']
    #allocation8 [shape = 'u8[1024]{0}', space=vmem, size = 0x400, scoped, tag = 'input window, operand 3, single buffered']
    #allocation9 [shape = 's32[1]{0}', space=sflag, size = 0x4, scoped, tag = 'scoped memory for tpu_custom_call.1']
    #allocation10 [shape = 'u8[512]{0}', space=vmem, size = 0x400, scoped, tag = 'input window, operand 4, single buffered']
    #allocation11 [shape = 'u8[512]{0}', space=vmem, size = 0x400, scoped, tag = 'input window, operand 5, single buffered']
    #allocation12 [shape = 's32[1]{0}', space=sflag, size = 0x4, scoped, tag = 'scoped memory for tpu_custom_call.1']
    #allocation13 [shape = 'u8[4096]{0}', space=vmem, size = 0x1000, scoped, tag = 'output window, operand 0']
    %11 = vsyncpa [#allocation3], 0
    %s12 = scalar_lea.sflag [#allocation3], 1
    %13 = vsyncpa %s12, 0
    %14 = vsyncpa [#allocation6], 0
    %s15 = scalar_lea.sflag [#allocation6], 1
    %16 = vsyncpa %s15, 0
    %17 = vsyncpa [#allocation9], 0
    %18 = vsyncpa [#allocation12], 0
    %19 = vsyncpa [#allocation4], 0
    %s20 = scalar_lea.sflag [#allocation4], 1
    %21 = vsyncpa %s20, 0
    loop: start=0, step=1, limit=4
    $region2: #{tpu_custom_call.1} parent=1 // loop_pre_header
      _
    $region3: #{tpu_custom_call.1} parent=1 // loop_header
      %s23 = sphi 0, %s27
      %p24 = scmp.ge.s32.totalorder %s23, 4
      %s33 = sphi 0, %s35
      %s36 = sphi 0, %s33
      %s37 = sphi 0, %s36
      %s53 = sphi 0, %s37
      %s59 = sphi 0, %s61
      %s62 = sphi 0, %s59
      %s63 = sphi 0, %s62
      %s79 = sphi 0, %s63
      %s83 = sphi 0, %s83
      %s85 = sphi 0, %s83
      %s86 = sphi 0, %s85
      %s100 = sphi 0, %s86
      %s104 = sphi 0, %s104
      %s106 = sphi 0, %s104
      %s107 = sphi 0, %s106
      %s121 = sphi 0, %s107
      %s125 = sphi 0, %s125
      %s127 = sphi 0, %s125
      %s128 = sphi 0, %s127
      %s142 = sphi 0, %s128
      %s146 = sphi 0, %s146
      %s148 = sphi 0, %s146
      %s149 = sphi 0, %s148
      %s163 = sphi 0, %s149
      %s169 = sphi 0, %s171
      %s172 = sphi 0, %s169
      %s173 = sphi 0, %s172
      %s189 = sphi 0, %s173
    $region4: #{tpu_custom_call.1} parent=1 // loop_header_branch
      %26 = sbr.rel (%p24) target = $region8
    $region5: #{tpu_custom_call.1} parent=1 // loop_body
      %s28 = ssub.s32 %s23, 1
      %s29 = ssub.s32 %s23, 2
      %s30 = sadd.s32 %s23, 1
      %s31 = ssub.s32 %s23, %s30
      %p32 = scmp.eq.s32.totalorder %s31, 0
      %s34 = sadd.s32 %s33, 1
      %s35 = scalar_select %p32, %s33, %s34
      %p38 = pneg %p32
      %p39 = scmp.eq.s32.totalorder %s23, 1
      %p40 = por %p38, %p39
      %p41 = scmp.ne.s32.totalorder %s33, %s36
      %p42 = scmp.eq.s32.totalorder %s23, 0
      %p43 = por %p41, %p42
      %p44 = scmp.ne.s32.totalorder %s33, %s36
      %p45 = scmp.eq.s32.totalorder %s28, 1
      %p46 = por %p44, %p45
      %p47 = scmp.ne.s32.totalorder %s36, %s37
      %p48 = scmp.eq.s32.totalorder %s28, 0
      %p49 = por %p47, %p48
      %p50 = scmp.ne.s32.totalorder %s36, %s37
      %p51 = scmp.eq.s32.totalorder %s29, 1
      %p52 = por %p50, %p51
      %p54 = scmp.ne.s32.totalorder %s37, %s53
      %p55 = scmp.eq.s32.totalorder %s29, 0
      %p56 = por %p54, %p55
      %s57 = ssub.s32 %s23, %s30
      %p58 = scmp.eq.s32.totalorder %s57, 0
      %s60 = sadd.s32 %s59, 1
      %s61 = scalar_select %p58, %s59, %s60
      %p64 = pneg %p58
      %p65 = scmp.eq.s32.totalorder %s23, 1
      %p66 = por %p64, %p65
      %p67 = scmp.ne.s32.totalorder %s59, %s62
      %p68 = scmp.eq.s32.totalorder %s23, 0
      %p69 = por %p67, %p68
      %p70 = scmp.ne.s32.totalorder %s59, %s62
      %p71 = scmp.eq.s32.totalorder %s28, 1
      %p72 = por %p70, %p71
      %p73 = scmp.ne.s32.totalorder %s62, %s63
      %p74 = scmp.eq.s32.totalorder %s28, 0
      %p75 = por %p73, %p74
      %p76 = scmp.ne.s32.totalorder %s62, %s63
      %p77 = scmp.eq.s32.totalorder %s29, 1
      %p78 = por %p76, %p77
      %p80 = scmp.ne.s32.totalorder %s63, %s79
      %p81 = scmp.eq.s32.totalorder %s29, 0
      %p82 = por %p80, %p81
      %s84 = sadd.s32 %s83, 1
      %p87 = scmp.eq.s32.totalorder %s23, 1
      %p88 = scmp.ne.s32.totalorder %s83, %s85
      %p89 = scmp.eq.s32.totalorder %s23, 0
      %p90 = por %p88, %p89
      %p91 = scmp.ne.s32.totalorder %s83, %s85
      %p92 = scmp.eq.s32.totalorder %s28, 1
      %p93 = por %p91, %p92
      %p94 = scmp.ne.s32.totalorder %s85, %s86
      %p95 = scmp.eq.s32.totalorder %s28, 0
      %p96 = por %p94, %p95
      %p97 = scmp.ne.s32.totalorder %s85, %s86
      %p98 = scmp.eq.s32.totalorder %s29, 1
      %p99 = por %p97, %p98
      %p101 = scmp.ne.s32.totalorder %s86, %s100
      %p102 = scmp.eq.s32.totalorder %s29, 0
      %p103 = por %p101, %p102
      %s105 = sadd.s32 %s104, 1
      %p108 = scmp.eq.s32.totalorder %s23, 1
      %p109 = scmp.ne.s32.totalorder %s104, %s106
      %p110 = scmp.eq.s32.totalorder %s23, 0
      %p111 = por %p109, %p110
      %p112 = scmp.ne.s32.totalorder %s104, %s106
      %p113 = scmp.eq.s32.totalorder %s28, 1
      %p114 = por %p112, %p113
      %p115 = scmp.ne.s32.totalorder %s106, %s107
      %p116 = scmp.eq.s32.totalorder %s28, 0
      %p117 = por %p115, %p116
      %p118 = scmp.ne.s32.totalorder %s106, %s107
      %p119 = scmp.eq.s32.totalorder %s29, 1
      %p120 = por %p118, %p119
      %p122 = scmp.ne.s32.totalorder %s107, %s121
      %p123 = scmp.eq.s32.totalorder %s29, 0
      %p124 = por %p122, %p123
      %s126 = sadd.s32 %s125, 1
      %p129 = scmp.eq.s32.totalorder %s23, 1
      %p130 = scmp.ne.s32.totalorder %s125, %s127
      %p131 = scmp.eq.s32.totalorder %s23, 0
      %p132 = por %p130, %p131
      %p133 = scmp.ne.s32.totalorder %s125, %s127
      %p134 = scmp.eq.s32.totalorder %s28, 1
      %p135 = por %p133, %p134
      %p136 = scmp.ne.s32.totalorder %s127, %s128
      %p137 = scmp.eq.s32.totalorder %s28, 0
      %p138 = por %p136, %p137
      %p139 = scmp.ne.s32.totalorder %s127, %s128
      %p140 = scmp.eq.s32.totalorder %s29, 1
      %p141 = por %p139, %p140
      %p143 = scmp.ne.s32.totalorder %s128, %s142
      %p144 = scmp.eq.s32.totalorder %s29, 0
      %p145 = por %p143, %p144
      %s147 = sadd.s32 %s146, 1
      %p150 = scmp.eq.s32.totalorder %s23, 1
      %p151 = scmp.ne.s32.totalorder %s146, %s148
      %p152 = scmp.eq.s32.totalorder %s23, 0
      %p153 = por %p151, %p152
      %p154 = scmp.ne.s32.totalorder %s146, %s148
      %p155 = scmp.eq.s32.totalorder %s28, 1
      %p156 = por %p154, %p155
      %p157 = scmp.ne.s32.totalorder %s148, %s149
      %p158 = scmp.eq.s32.totalorder %s28, 0
      %p159 = por %p157, %p158
      %p160 = scmp.ne.s32.totalorder %s148, %s149
      %p161 = scmp.eq.s32.totalorder %s29, 1
      %p162 = por %p160, %p161
      %p164 = scmp.ne.s32.totalorder %s149, %s163
      %p165 = scmp.eq.s32.totalorder %s29, 0
      %p166 = por %p164, %p165
      %s167 = ssub.s32 %s23, %s30
      %p168 = scmp.eq.s32.totalorder %s167, 0
      %s170 = sadd.s32 %s169, 1
      %s171 = scalar_select %p168, %s169, %s170
      %p174 = pneg %p168
      %p175 = scmp.eq.s32.totalorder %s23, 1
      %p176 = por %p174, %p175
      %p177 = scmp.ne.s32.totalorder %s169, %s172
      %p178 = scmp.eq.s32.totalorder %s23, 0
      %p179 = por %p177, %p178
      %p180 = scmp.ne.s32.totalorder %s169, %s172
      %p181 = scmp.eq.s32.totalorder %s28, 1
      %p182 = por %p180, %p181
      %p183 = scmp.ne.s32.totalorder %s172, %s173
      %p184 = scmp.eq.s32.totalorder %s28, 0
      %p185 = por %p183, %p184
      %p186 = scmp.ne.s32.totalorder %s172, %s173
      %p187 = scmp.eq.s32.totalorder %s29, 1
      %p188 = por %p186, %p187
      %p190 = scmp.ne.s32.totalorder %s173, %s189
      %p191 = scmp.eq.s32.totalorder %s29, 0
      %p192 = por %p190, %p191
      %p193 = scmp.le.s32.totalorder 1, %s23
      %p194 = scmp.lt.s32.totalorder %s23, 3
      %p195 = pnand %p193, %p194
      %p196 = pneg %p195
      // Predicated region
      $region9: #{tpu_custom_call.1} parent=5 // pred_check
        _
      $region10: #{tpu_custom_call.1} parent=5 // pred_check_branch
        %198 = sbr.rel (%p195) target = $region12
      $region11: #{tpu_custom_call.1} parent=5 // pred_region
        %s199 = ssub.s32 %s23, 1
        // Predicated region
        $region13: #{tpu_custom_call.1} parent=11 // pred_check
          %p200 = pneg %p96
        $region14: #{tpu_custom_call.1} parent=11 // pred_check_branch
          %202 = sbr.rel (%p200) target = $region16
        $region15: #{tpu_custom_call.1} parent=11 // pred_region
          %s204 = ssub.s32 128, 128
          %205 = vsyncadd [#allocation6], %s204
          %s207 = sshll.u32 [#allocation7], 4
          %s208 = int_to_ptr.vmem [resolvable:$true] %s207
          %210 = dma.hbm_to_vmem [thread:$0]  %s2, 128, %s208, [#allocation6]
        $region16: #{tpu_custom_call.1} parent=11 // pred_fallthru
          _
        // Predicated region
        $region17: #{tpu_custom_call.1} parent=11 // pred_check
          %p211 = pneg %p117
        $region18: #{tpu_custom_call.1} parent=11 // pred_check_branch
          %213 = sbr.rel (%p211) target = $region20
        $region19: #{tpu_custom_call.1} parent=11 // pred_region
          %s215 = ssub.s32 32, 32
          %216 = vsyncadd [#allocation9], %s215
          %s218 = sshll.u32 [#allocation8], 4
          %s219 = int_to_ptr.vmem [resolvable:$true] %s218
          %221 = dma.hbm_to_vmem [thread:$0]  %s3, 32, %s219, [#allocation9]
        $region20: #{tpu_custom_call.1} parent=11 // pred_fallthru
          _
        // Predicated region
        $region21: #{tpu_custom_call.1} parent=11 // pred_check
          %p222 = pneg %p138
        $region22: #{tpu_custom_call.1} parent=11 // pred_check_branch
          %224 = sbr.rel (%p222) target = $region24
        $region23: #{tpu_custom_call.1} parent=11 // pred_region
          %s226 = ssub.s32 16, 16
          %227 = vsyncadd [#allocation9], %s226
          %s229 = sshll.u32 [#allocation10], 4
          %s230 = int_to_ptr.vmem [resolvable:$true] %s229
          %232 = dma.hbm_to_vmem [thread:$0]  %s4, 16, %s230, [#allocation9]
        $region24: #{tpu_custom_call.1} parent=11 // pred_fallthru
          _
        // Predicated region
        $region25: #{tpu_custom_call.1} parent=11 // pred_check
          %p233 = pneg %p159
        $region26: #{tpu_custom_call.1} parent=11 // pred_check_branch
          %235 = sbr.rel (%p233) target = $region28
        $region27: #{tpu_custom_call.1} parent=11 // pred_region
          %s237 = ssub.s32 16, 16
          %238 = vsyncadd [#allocation12], %s237
          %s240 = sshll.u32 [#allocation11], 4
          %s241 = int_to_ptr.vmem [resolvable:$true] %s240
          %243 = dma.hbm_to_vmem [thread:$0]  %s5, 16, %s241, [#allocation12]
        $region28: #{tpu_custom_call.1} parent=11 // pred_fallthru
          _
      $region12: #{tpu_custom_call.1} parent=5 // pred_fallthru
        _
      %p244 = scmp.lt.s32.totalorder %s23, 2
      // Predicated region
      $region29: #{tpu_custom_call.1} parent=5 // pred_check
        %p245 = pneg %p244
      $region30: #{tpu_custom_call.1} parent=5 // pred_check_branch
        %247 = sbr.rel (%p245) target = $region32
      $region31: #{tpu_custom_call.1} parent=5 // pred_region
        // Predicated region
        $region33: #{tpu_custom_call.1} parent=31 // pred_check
          %p248 = pneg %p43
        $region34: #{tpu_custom_call.1} parent=31 // pred_check_branch
          %250 = sbr.rel (%p248) target = $region36
        $region35: #{tpu_custom_call.1} parent=31 // pred_region
          %s251 = sand.u32 %s33, 1
          %s252 = scalar_lea.sflag [#allocation3], %s251
          %s253 = sand.u32 %s33, 1
          %s254 = smul.addr %s253, 4
          %s255 = scalar_lea.vmem [#allocation2], %s254
          %s257 = ssub.s32 64, 64
          %258 = vsyncadd %s252, %s257
          %s259 = smul.addr %s23, 64
          %s260 = scalar_lea.hbm %s0, %s259
          %s262 = sshll.u32 %s255, 4
          %s263 = int_to_ptr.vmem [resolvable:$true] %s262
          %265 = dma.hbm_to_vmem [thread:$0]  %s260, 64, %s263, %s252
        $region36: #{tpu_custom_call.1} parent=31 // pred_fallthru
          _
        // Predicated region
        $region37: #{tpu_custom_call.1} parent=31 // pred_check
          %p266 = pneg %p69
        $region38: #{tpu_custom_call.1} parent=31 // pred_check_branch
          %268 = sbr.rel (%p266) target = $region40
        $region39: #{tpu_custom_call.1} parent=31 // pred_region
          %s269 = sand.u32 %s23, 1
          %s270 = scalar_lea.sflag [#allocation6], %s269
          %s271 = sand.u32 %s59, 1
          %s272 = smul.addr %s271, 8
          %s273 = scalar_lea.vmem [#allocation5], %s272
          %s275 = ssub.s32 128, 128
          %276 = vsyncadd %s270, %s275
          %s277 = smul.addr %s23, 128
          %s278 = scalar_lea.hbm %s1, %s277
          %s280 = sshll.u32 %s273, 4
          %s281 = int_to_ptr.vmem [resolvable:$true] %s280
          %283 = dma.hbm_to_vmem [thread:$0]  %s278, 128, %s281, %s270
        $region40: #{tpu_custom_call.1} parent=31 // pred_fallthru
          _
      $region32: #{tpu_custom_call.1} parent=5 // pred_fallthru
        _
      %p284 = scmp.le.s32.totalorder 1, %s23
      %p285 = scmp.lt.s32.totalorder %s23, 3
      %p286 = pnand %p284, %p285
      %p287 = pneg %p286
      // Predicated region
      $region41: #{tpu_custom_call.1} parent=5 // pred_check
        _
      $region42: #{tpu_custom_call.1} parent=5 // pred_check_branch
        %289 = sbr.rel (%p286) target = $region44
      $region43: #{tpu_custom_call.1} parent=5 // pred_region
        %s290 = ssub.s32 %s23, 1
        %s291 = sand.u32 %s36, 1
        %s292 = scalar_lea.sflag [#allocation3], %s291
        %s293 = sand.u32 %s36, 1
        %s294 = smul.addr %s293, 4
        %s295 = scalar_lea.vmem [#allocation2], %s294
        // Predicated region
        $region45: #{tpu_custom_call.1} parent=43 // pred_check
          %p296 = pneg %p49
        $region46: #{tpu_custom_call.1} parent=43 // pred_check_branch
          %298 = sbr.rel (%p296) target = $region48
        $region47: #{tpu_custom_call.1} parent=43 // pred_region
          %299 = dma.done %s292, 64
        $region48: #{tpu_custom_call.1} parent=43 // pred_fallthru
          _
        %s300 = sand.u32 %s28, 1
        %s301 = scalar_lea.sflag [#allocation6], %s300
        %s302 = sand.u32 %s62, 1
        %s303 = smul.addr %s302, 8
        %s304 = scalar_lea.vmem [#allocation5], %s303
        // Predicated region
        $region49: #{tpu_custom_call.1} parent=43 // pred_check
          %p305 = pneg %p75
        $region50: #{tpu_custom_call.1} parent=43 // pred_check_branch
          %307 = sbr.rel (%p305) target = $region52
        $region51: #{tpu_custom_call.1} parent=43 // pred_region
          %308 = dma.done %s301, 128
        $region52: #{tpu_custom_call.1} parent=43 // pred_fallthru
          _
        // Predicated region
        $region53: #{tpu_custom_call.1} parent=43 // pred_check
          %p309 = pneg %p96
        $region54: #{tpu_custom_call.1} parent=43 // pred_check_branch
          %311 = sbr.rel (%p309) target = $region56
        $region55: #{tpu_custom_call.1} parent=43 // pred_region
          %312 = dma.done [#allocation6], 128
        $region56: #{tpu_custom_call.1} parent=43 // pred_fallthru
          _
        // Predicated region
        $region57: #{tpu_custom_call.1} parent=43 // pred_check
          %p313 = pneg %p117
        $region58: #{tpu_custom_call.1} parent=43 // pred_check_branch
          %315 = sbr.rel (%p313) target = $region60
        $region59: #{tpu_custom_call.1} parent=43 // pred_region
          %316 = dma.done [#allocation9], 32
        $region60: #{tpu_custom_call.1} parent=43 // pred_fallthru
          _
        // Predicated region
        $region61: #{tpu_custom_call.1} parent=43 // pred_check
          %p317 = pneg %p138
        $region62: #{tpu_custom_call.1} parent=43 // pred_check_branch
          %319 = sbr.rel (%p317) target = $region64
        $region63: #{tpu_custom_call.1} parent=43 // pred_region
          %320 = dma.done [#allocation9], 16
        $region64: #{tpu_custom_call.1} parent=43 // pred_fallthru
          _
        // Predicated region
        $region65: #{tpu_custom_call.1} parent=43 // pred_check
          %p321 = pneg %p159
        $region66: #{tpu_custom_call.1} parent=43 // pred_check_branch
          %323 = sbr.rel (%p321) target = $region68
        $region67: #{tpu_custom_call.1} parent=43 // pred_region
          %324 = dma.done [#allocation12], 16
        $region68: #{tpu_custom_call.1} parent=43 // pred_fallthru
          _
        %s325 = sand.u32 %s36, 1
        %s326 = scalar_lea.sflag [#allocation3], %s325
        %s327 = sand.u32 %s36, 1
        %s328 = smul.addr %s327, 4
        %s329 = scalar_lea.vmem [#allocation2], %s328
        %p330 = pneg %p49
        %p331 = pneg %p46
        %s332 = sand.u32 %s28, 1
        %s333 = scalar_lea.sflag [#allocation6], %s332
        %s334 = sand.u32 %s62, 1
        %s335 = smul.addr %s334, 8
        %s336 = scalar_lea.vmem [#allocation5], %s335
        %p337 = pneg %p75
        %p338 = pneg %p72
        %p339 = pneg %p96
        %p340 = pneg %p93
        %p341 = pneg %p117
        %p342 = pneg %p114
        %p343 = pneg %p138
        %p344 = pneg %p135
        %p345 = pneg %p159
        %p346 = pneg %p156
        %p347 = pneg %p185
        %p348 = pneg %p182
        %s349 = sand.u32 %s172, 1
        %s350 = scalar_lea.sflag [#allocation4], %s349
        %s351 = sand.u32 %s172, 1
        %s352 = smul.addr %s351, 4
        %s353 = scalar_lea.vmem [#allocation13], %s352
        %v354 = vld [vmem:[%s295] sm:$0xf]
        %v355 = vunpack.c.l.bf16 %v354
        %v356 = vld [vmem:[%s304] sm:$0xff]
        %v357 = vcvt.s32.f32 %v356
        %v358 = vld [vmem:[#allocation8] sm:$0x1]
        %v359 = vld [vmem:[#allocation8 + $0x1] sm:$0x1]
        %v360 = vsub.f32 %v359, %v358
        %362 = vset.pattern.permute.xlu0 0
        %363 = vperm.xlu0 %362, %v357
        %v364 = vpop.permute.xlu0 %363
        %v366 = vlaneseq
        %v367 = vshrl.u32 %v366, 7
        %v368 = vsub.s32 0, %v367
        %v369 = vrot.slane %v360, %v368
        %v370 = vmul.f32 %v364, %v369
        %v371 = vlaneseq
        %v372 = vshrl.u32 %v371, 7
        %v373 = vsub.s32 0, %v372
        %v374 = vrot.slane %v358, %v373
        %v375 = vadd.f32 %v374, %v370
        %v376 = vld [vmem:[#allocation7] sm:$0xff]
        %v377 = vadd.f32 %v355, %v376
        %v378 = vadd.f32 %v377, %v375
        %v379 = vld [vmem:[#allocation10] sm:$0x1]
        %v380 = vld [vmem:[#allocation11] sm:$0x1]
        %vm381 = vcmask 261120
        %v382 = vsel %vm381, %v378, 0.0
        %383 = vadd.xlane.f32.xlu0 %v382
        %v384 = vpop.xlane.xlu0 %383
        %v385 = vrcp.pop 32.0
        %v386 = vmul.f32 %v384, %v385
        %v387 = vsub.f32 %v378, %v386
        %v388 = vmul.f32 %v387, %v387
        %v389 = vsel %vm381, %v388, 0.0
        %390 = vadd.xlane.f32.xlu0 %v389
        %v391 = vpop.xlane.xlu0 %390
        %v392 = vmul.f32 %v391, %v385
        %v393 = vadd.f32 %v392, 1e-12
        %v394 = vrsqrt.pop %v393
        %v395 = vmul.f32 %v387, %v394
        %v397 = vlaneseq
        %v398 = vshrl.u32 %v397, 7
        %v399 = vsub.s32 0, %v398
        %v400 = vrot.slane %v379, %v399
        %v402 = vmul.f32 %v395, %v400
        %v404 = vlaneseq
        %v405 = vshrl.u32 %v404, 7
        %v406 = vsub.s32 0, %v405
        %v407 = vrot.slane %v380, %v406
        %v409 = vadd.f32 %v402, %v407
        %v410 = vpack.c.bf16 %v409, %v409
        %vm411 = vcmask 257024
        %412 = vst.msk [vmem:[%s353] sm:$0xf] %vm411, %v410
        %s413 = sand.u32 %s172, 1
        %s414 = scalar_lea.sflag [#allocation4], %s413
        %s415 = sand.u32 %s172, 1
        %s416 = smul.addr %s415, 4
        %s417 = scalar_lea.vmem [#allocation13], %s416
        // Predicated region
        $region69: #{tpu_custom_call.1} parent=43 // pred_check
          %p418 = pneg %p182
        $region70: #{tpu_custom_call.1} parent=43 // pred_check_branch
          %420 = sbr.rel (%p418) target = $region72
        $region71: #{tpu_custom_call.1} parent=43 // pred_region
          %s422 = ssub.s32 64, 64
          %423 = vsyncadd %s414, %s422
          %s424 = smul.addr %s28, 64
          %s425 = scalar_lea.hbm %s6, %s424
          %s427 = sshll.u32 %s417, 4
          %s428 = int_to_ptr.vmem [resolvable:$true] %s427
          %430 = dma.vmem_to_hbm [thread:$0]  %s428, 64, %s425, %s414
        $region72: #{tpu_custom_call.1} parent=43 // pred_fallthru
          _
      $region44: #{tpu_custom_call.1} parent=5 // pred_fallthru
        _
      %p431 = scmp.le.s32.totalorder 2, %s23
      // Predicated region
      $region73: #{tpu_custom_call.1} parent=5 // pred_check
        %p432 = pneg %p431
      $region74: #{tpu_custom_call.1} parent=5 // pred_check_branch
        %434 = sbr.rel (%p432) target = $region76
      $region75: #{tpu_custom_call.1} parent=5 // pred_region
        %s435 = ssub.s32 %s23, 2
        // Predicated region
        $region77: #{tpu_custom_call.1} parent=75 // pred_check
          %p436 = pneg %p188
        $region78: #{tpu_custom_call.1} parent=75 // pred_check_branch
          %438 = sbr.rel (%p436) target = $region80
        $region79: #{tpu_custom_call.1} parent=75 // pred_region
          %s439 = sand.u32 %s173, 1
          %s440 = scalar_lea.sflag [#allocation4], %s439
          %s441 = sand.u32 %s173, 1
          %s442 = smul.addr %s441, 4
          %s443 = scalar_lea.vmem [#allocation13], %s442
          %444 = dma.done %s440, 64
        $region80: #{tpu_custom_call.1} parent=75 // pred_fallthru
          _
      $region76: #{tpu_custom_call.1} parent=5 // pred_fallthru
        _
    $region6: #{tpu_custom_call.1} parent=1 // loop_footer
      %s27 = sadd.s32 1, %s23
    $region7: #{tpu_custom_call.1} parent=1 // loop_footer_branch
      %22 = sbr.rel target = $region3
    $region8: #{tpu_custom_call.1} parent=1 // loop_exit
      _
    %445 = vsyncpa [#allocation3], 1
    %s446 = scalar_lea.sflag [#allocation3], 1
    %447 = vsyncpa %s446, 1
    %448 = vsyncpa [#allocation6], 1
    %s449 = scalar_lea.sflag [#allocation6], 1
    %450 = vsyncpa %s449, 1
    %451 = vsyncpa [#allocation9], 1
    %452 = vsyncpa [#allocation12], 1
    %453 = vsyncpa [#allocation4], 1
    %s454 = scalar_lea.sflag [#allocation4], 1
    %455 = vsyncpa %s454, 1

</llo_original>
